<compile_context>
chip_gen: v7x
topology: tpu7x:2x2x1
jax: 0.10.0
libtpu: 0.0.40
codegen_flags: <defaults>
</compile_context>

<pallas_src>
import math

import numpy as np
import jax
import jax.numpy as jnp
from jax.experimental import pallas as pl
from jax.experimental.pallas import tpu as pltpu

# ------------------------------ configuration -------------------------------
BATCH = 2
T_AUDIO = 512                       # raw waveform length
N_MELS = 16
CHANNELS = 32                       # output_channels
DS_FACTOR = 32                      # hop length
OVERSAMPLE = 2
N_FFT = OVERSAMPLE * DS_FACTOR      # 64
N_FREQ = N_FFT // 2 + 1             # 33
SAMPLE_RATE = 24000
PAD_TOT = N_FFT - DS_FACTOR
PAD_LEFT = PAD_TOT // 2
PAD_RIGHT = PAD_TOT - PAD_LEFT
N_FRAMES = 16                       # (544 - 64)//32 + 1 for T_AUDIO=512
BT = BATCH * N_FRAMES               # 32 rows processed in one kernel step
NORM_CLAMP = 1e-5


# -------------------------------- the kernel ---------------------------------
def _mel_adapter_kernel(frames_ref, wcos_ref, wsin_ref, melfb_ref,
                        conv_w_ref, conv_b_ref,
                        cb_w1_ref, cb_b1_ref, cb_a1_ref,
                        cb_w2_ref, cb_b2_ref, cb_a2_ref,
                        out_ref):
    frames = frames_ref[...]                                    # (BT, N_FFT)

    # Windowed-DFT power spectrum via two matmuls (hann window folded into the
    # cos/sin bases at parameter-prep time).
    re = jnp.dot(frames, wcos_ref[...], preferred_element_type=jnp.float32)
    im = jnp.dot(frames, wsin_ref[...], preferred_element_type=jnp.float32)
    power = re * re + im * im                                   # (BT, N_FREQ)

    # Mel filterbank.
    mel = jnp.dot(power, melfb_ref[...],
                  preferred_element_type=jnp.float32)           # (BT, N_MELS)

    # Per-batch energy normalization:
    #   norm_b = sqrt(mean_t(sum_mel(mel^2))); mel /= clamp(norm_b, 1e-5)
    mel3 = mel.reshape(BATCH, N_FRAMES, N_MELS)
    energy = jnp.sum(mel3 * mel3, axis=-1, keepdims=True)       # (B, T, 1)
    norm = jnp.sqrt(jnp.sum(energy, axis=1, keepdims=True) * (1.0 / N_FRAMES))
    inv = pl.reciprocal(jnp.maximum(norm, NORM_CLAMP), approx=True)   # EUP
    mel3 = mel3 * inv                                           # (B, T, N_MELS)

    # Conv1d(k=3, padding='same') as a single fused lane-dense matmul:
    # lane-concat the t-1 / t / t+1 taps, then hit the MXU once.
    def shifted_cat(x):                                         # (B,T,F)->(B,T,3F)
        zero = jnp.zeros_like(x[:, :1, :])
        prev = jnp.concatenate([zero, x[:, :-1, :]], axis=1)
        nxt = jnp.concatenate([x[:, 1:, :], zero], axis=1)
        return jnp.concatenate([prev, x, nxt], axis=-1)

    xc = shifted_cat(mel3).reshape(BT, 3 * N_MELS)
    h = jnp.dot(xc, conv_w_ref[...],
                preferred_element_type=jnp.float32) + conv_b_ref[...]   # (BT, C)

    # ConvBlock (approximated, see TODO at top):
    #   residual( PReLU -> Conv1d(k=3) -> PReLU -> Conv1d(k=3) )
    def prelu(v, a):                                            # a: (1,1) broadcast
        return jnp.where(v > 0, v, a * v)

    h3 = h.reshape(BATCH, N_FRAMES, CHANNELS)
    t1 = shifted_cat(prelu(h3, cb_a1_ref[...])).reshape(BT, 3 * CHANNELS)
    y1 = jnp.dot(t1, cb_w1_ref[...],
                 preferred_element_type=jnp.float32) + cb_b1_ref[...]
    y13 = y1.reshape(BATCH, N_FRAMES, CHANNELS)
    t2 = shifted_cat(prelu(y13, cb_a2_ref[...])).reshape(BT, 3 * CHANNELS)
    y2 = jnp.dot(t2, cb_w2_ref[...],
                 preferred_element_type=jnp.float32) + cb_b2_ref[...]

    out_ref[...] = h + y2                                       # lane-dense store


# -------------------------------- the wrapper --------------------------------
def mel_adapter(x, params):
    """x: (B, 1, T) waveform -> (B, CHANNELS, N_FRAMES) (torch layout)."""
    b, _, t = x.shape
    assert b == BATCH and t == T_AUDIO

    # Host-side glue (cheap): padding + overlapping framing (hop=DS, win=N_FFT).
    r = t % DS_FACTOR
    pad = (DS_FACTOR - r) % DS_FACTOR
    xp = jnp.pad(x[:, 0, :], ((0, 0), (PAD_LEFT, pad + PAD_RIGHT)))
    n_frames = (xp.shape[-1] - N_FFT) // DS_FACTOR + 1
    assert n_frames == N_FRAMES
    idx = jnp.arange(N_FRAMES)[:, None] * DS_FACTOR + jnp.arange(N_FFT)[None, :]
    frames = jnp.take(xp, idx, axis=-1).reshape(BT, N_FFT)      # (B*T_frames, N_FFT)

    vmem = pl.BlockSpec(memory_space=pltpu.MemorySpace.VMEM)
    args = (frames,
            params["wcos"], params["wsin"], params["melfb"],
            params["conv_w"], params["conv_b"],
            params["cb_w1"], params["cb_b1"], params["cb_a1"],
            params["cb_w2"], params["cb_b2"], params["cb_a2"])

    out_flat = pl.pallas_call(
        _mel_adapter_kernel,
        out_shape=jax.ShapeDtypeStruct((BT, CHANNELS), jnp.float32),
        in_specs=[vmem] * len(args),
        out_specs=vmem,
    )(*args)

    # (B*T, C) -> (B, C, T) to match the torch module's output layout.
    return jnp.transpose(out_flat.reshape(BATCH, N_FRAMES, CHANNELS), (0, 2, 1))


# ------------------------------ parameter prep -------------------------------
def make_params(key):
    ks = jax.random.split(key, 4)

    # Windowed DFT bases (periodic hann folded in) + HTK mel filterbank,
    # matching torchaudio MelSpectrogram(power=2, norm=None, mel_scale='htk').
    n = np.arange(N_FFT)
    hann = 0.5 - 0.5 * np.cos(2.0 * np.pi * n / N_FFT)
    ang = 2.0 * np.pi * np.outer(n, np.arange(N_FREQ)) / N_FFT        # (N_FFT, N_FREQ)
    wcos = (hann[:, None] * np.cos(ang)).astype(np.float32)
    wsin = (hann[:, None] * np.sin(ang)).astype(np.float32)

    def hz_to_mel(f):
        return 2595.0 * np.log10(1.0 + f / 700.0)

    def mel_to_hz(m):
        return 700.0 * (10.0 ** (m / 2595.0) - 1.0)

    all_freqs = np.linspace(0.0, SAMPLE_RATE / 2.0, N_FREQ)
    m_pts = np.linspace(hz_to_mel(0.0), hz_to_mel(SAMPLE_RATE / 2.0), N_MELS + 2)
    f_pts = mel_to_hz(m_pts)
    f_diff = f_pts[1:] - f_pts[:-1]
    slopes = f_pts[None, :] - all_freqs[:, None]                       # (N_FREQ, N_MELS+2)
    down = -slopes[:, :-2] / f_diff[:-1]
    up = slopes[:, 2:] / f_diff[1:]
    melfb = np.maximum(0.0, np.minimum(down, up)).astype(np.float32)   # (N_FREQ, N_MELS)

    def conv_w(k, cin, cout):
        # torch Conv1d weight (cout, cin, 3) -> stacked (3*cin, cout) used with
        # the [x(t-1)|x(t)|x(t+1)] lane-concat.
        w = jax.random.normal(k, (cout, cin, 3), jnp.float32) * (1.0 / math.sqrt(3 * cin))
        return jnp.transpose(w, (2, 1, 0)).reshape(3 * cin, cout)

    return {
        "wcos": jnp.asarray(wcos),
        "wsin": jnp.asarray(wsin),
        "melfb": jnp.asarray(melfb),
        "conv_w": conv_w(ks[0], N_MELS, CHANNELS),
        "conv_b": 0.01 * jnp.ones((1, CHANNELS), jnp.float32),
        "cb_w1": conv_w(ks[1], CHANNELS, CHANNELS),
        "cb_b1": jnp.zeros((1, CHANNELS), jnp.float32),
        "cb_a1": 0.25 * jnp.ones((1, 1), jnp.float32),                 # PReLU init
        "cb_w2": conv_w(ks[2], CHANNELS, CHANNELS),
        "cb_b2": jnp.zeros((1, CHANNELS), jnp.float32),
        "cb_a2": 0.25 * jnp.ones((1, 1), jnp.float32),
    }


# --------------------------- pure-JAX reference check -------------------------
def _reference(x, p):
    r = T_AUDIO % DS_FACTOR
    pad = (DS_FACTOR - r) % DS_FACTOR
    xp = jnp.pad(x[:, 0, :], ((0, 0), (PAD_LEFT, pad + PAD_RIGHT)))
    idx = jnp.arange(N_FRAMES)[:, None] * DS_FACTOR + jnp.arange(N_FFT)[None, :]
    frames = jnp.take(xp, idx, axis=-1).reshape(BT, N_FFT)

    re = frames @ p["wcos"]
    im = frames @ p["wsin"]
    mel = (re * re + im * im) @ p["melfb"]
    mel3 = mel.reshape(BATCH, N_FRAMES, N_MELS)
    norm = jnp.sqrt(((mel3 ** 2).sum(-1, keepdims=True)).mean(axis=1, keepdims=True))
    mel3 = mel3 / jnp.maximum(norm, NORM_CLAMP)

    def conv_same(v, w, bias):                       # v: (B, T, F), w: (3F, C)
        zero = jnp.zeros_like(v[:, :1, :])
        prev = jnp.concatenate([zero, v[:, :-1, :]], axis=1)
        nxt = jnp.concatenate([v[:, 1:, :], zero], axis=1)
        cat = jnp.concatenate([prev, v, nxt], axis=-1).reshape(BT, -1)
        return cat @ w + bias

    prelu = lambda v, a: jnp.where(v > 0, v, a * v)
    h = conv_same(mel3, p["conv_w"], p["conv_b"])
    h3 = h.reshape(BATCH, N_FRAMES, CHANNELS)
    y1 = conv_same(prelu(h3, p["cb_a1"]), p["cb_w1"], p["cb_b1"])
    y13 = y1.reshape(BATCH, N_FRAMES, CHANNELS)
    y2 = conv_same(prelu(y13, p["cb_a2"]), p["cb_w2"], p["cb_b2"])
    out = h + y2
    return jnp.transpose(out.reshape(BATCH, N_FRAMES, CHANNELS), (0, 2, 1))


# ------------------------------------ main ------------------------------------
if __name__ == "__main__":
    key = jax.random.PRNGKey(0)
    k_x, k_p = jax.random.split(key)

    x = jax.random.normal(k_x, (BATCH, 1, T_AUDIO), jnp.float32)   # (B, 1, T) waveform
    params = make_params(k_p)

    out = mel_adapter(x, params)
    out = jax.block_until_ready(out)

    assert out.shape == (BATCH, CHANNELS, N_FRAMES)
    assert bool(jnp.isfinite(out).all())

    ref = _reference(x, params)
    # Aggregate relative error (robust to MXU precision / approx-reciprocal).
    rel_err = jnp.sqrt(jnp.sum((out - ref) ** 2) / jnp.sum(ref ** 2))
    assert float(rel_err) < 5e-2, float(rel_err)

    print("KERNEL_OK")
</pallas_src>

<mosaic_0001>
module attributes {stable_mosaic.version = 11 : i64} {
  func.func @_mel_adapter_kernel(%arg0: memref<32x64xf32, #tpu.memory_space<vmem>>, %arg1: memref<64x33xf32, #tpu.memory_space<vmem>>, %arg2: memref<64x33xf32, #tpu.memory_space<vmem>>, %arg3: memref<33x16xf32, #tpu.memory_space<vmem>>, %arg4: memref<48x32xf32, #tpu.memory_space<vmem>>, %arg5: memref<1x32xf32, #tpu.memory_space<vmem>>, %arg6: memref<96x32xf32, #tpu.memory_space<vmem>>, %arg7: memref<1x32xf32, #tpu.memory_space<vmem>>, %arg8: memref<1x1xf32, #tpu.memory_space<vmem>>, %arg9: memref<96x32xf32, #tpu.memory_space<vmem>>, %arg10: memref<1x32xf32, #tpu.memory_space<vmem>>, %arg11: memref<1x1xf32, #tpu.memory_space<vmem>>, %arg12: memref<32x32xf32, #tpu.memory_space<vmem>>) attributes {dimension_semantics = [], scalar_prefetch = 0 : i64, scratch_operands = 0 : i64, tpu.core_type = #tpu.core_type<tc>} {
    %c0 = arith.constant 0 : index
    %c0_0 = arith.constant 0 : index
    %0 = vector.load %arg0[%c0, %c0_0] : memref<32x64xf32, #tpu.memory_space<vmem>>, vector<32x64xf32>
    %c0_1 = arith.constant 0 : index
    %c0_2 = arith.constant 0 : index
    %1 = vector.load %arg1[%c0_1, %c0_2] : memref<64x33xf32, #tpu.memory_space<vmem>>, vector<64x33xf32>
    %cst = arith.constant dense<0.000000e+00> : vector<32x33xf32>
    %2 = tpu.matmul %0, %1, %cst {dimension_numbers = #tpu.dot_dimension_numbers<[1], [0], [0], [1], [0, 0, 1, 1], [], []>} : vector<32x64xf32>, vector<64x33xf32>, vector<32x33xf32> -> vector<32x33xf32>
    %c0_3 = arith.constant 0 : index
    %c0_4 = arith.constant 0 : index
    %3 = vector.load %arg2[%c0_3, %c0_4] : memref<64x33xf32, #tpu.memory_space<vmem>>, vector<64x33xf32>
    %cst_5 = arith.constant dense<0.000000e+00> : vector<32x33xf32>
    %4 = tpu.matmul %0, %3, %cst_5 {dimension_numbers = #tpu.dot_dimension_numbers<[1], [0], [0], [1], [0, 0, 1, 1], [], []>} : vector<32x64xf32>, vector<64x33xf32>, vector<32x33xf32> -> vector<32x33xf32>
    %5 = arith.mulf %2, %2 : vector<32x33xf32>
    %6 = arith.mulf %4, %4 : vector<32x33xf32>
    %7 = arith.addf %5, %6 : vector<32x33xf32>
    %c0_6 = arith.constant 0 : index
    %c0_7 = arith.constant 0 : index
    %8 = vector.load %arg3[%c0_6, %c0_7] : memref<33x16xf32, #tpu.memory_space<vmem>>, vector<33x16xf32>
    %cst_8 = arith.constant dense<0.000000e+00> : vector<32x16xf32>
    %9 = tpu.matmul %7, %8, %cst_8 {dimension_numbers = #tpu.dot_dimension_numbers<[1], [0], [0], [1], [0, 0, 1, 1], [], []>} : vector<32x33xf32>, vector<33x16xf32>, vector<32x16xf32> -> vector<32x16xf32>
    %10 = vector.shape_cast %9 : vector<32x16xf32> to vector<2x16x16xf32>
    %11 = arith.mulf %10, %10 : vector<2x16x16xf32>
    %cst_9 = arith.constant dense<0.000000e+00> : vector<2x16xf32>
    %12 = vector.multi_reduction <add>, %11, %cst_9 [2] : vector<2x16x16xf32> to vector<2x16xf32>
    %13 = vector.shape_cast %12 : vector<2x16xf32> to vector<2x16x1xf32>
    %cst_10 = arith.constant dense<0.000000e+00> : vector<2x1xf32>
    %14 = vector.multi_reduction <add>, %13, %cst_10 [1] : vector<2x16x1xf32> to vector<2x1xf32>
    %15 = vector.shape_cast %14 : vector<2x1xf32> to vector<2x1x1xf32>
    %cst_11 = arith.constant 6.250000e-02 : f32
    %16 = vector.broadcast %cst_11 : f32 to vector<2x1x1xf32>
    %17 = arith.mulf %15, %16 : vector<2x1x1xf32>
    %18 = math.sqrt %17 : vector<2x1x1xf32>
    %cst_12 = arith.constant 9.99999974E-6 : f32
    %19 = vector.broadcast %cst_12 : f32 to vector<2x1x1xf32>
    %20 = arith.maximumf %18, %19 : vector<2x1x1xf32>
    %21 = tpu.reciprocal %20 {approx = true} : vector<2x1x1xf32> -> vector<2x1x1xf32>
    %22 = vector.broadcast %21 : vector<2x1x1xf32> to vector<2x16x16xf32>
    %23 = arith.mulf %10, %22 : vector<2x16x16xf32>
    %cst_13 = arith.constant 0.000000e+00 : f32
    %24 = vector.broadcast %cst_13 : f32 to vector<2x1x16xf32>
    %25 = vector.extract_strided_slice %23 {offsets = [0, 0, 0], sizes = [2, 15, 16], strides = [1, 1, 1]} : vector<2x16x16xf32> to vector<2x15x16xf32>
    %26 = tpu.concatenate %24, %25 in 1 : vector<2x1x16xf32>, vector<2x15x16xf32> -> vector<2x16x16xf32>
    %27 = vector.extract_strided_slice %23 {offsets = [0, 1, 0], sizes = [2, 15, 16], strides = [1, 1, 1]} : vector<2x16x16xf32> to vector<2x15x16xf32>
    %28 = tpu.concatenate %27, %24 in 1 : vector<2x15x16xf32>, vector<2x1x16xf32> -> vector<2x16x16xf32>
    %29 = tpu.concatenate %26, %23, %28 in 2 : vector<2x16x16xf32>, vector<2x16x16xf32>, vector<2x16x16xf32> -> vector<2x16x48xf32>
    %30 = vector.shape_cast %29 : vector<2x16x48xf32> to vector<32x48xf32>
    %c0_14 = arith.constant 0 : index
    %c0_15 = arith.constant 0 : index
    %31 = vector.load %arg4[%c0_14, %c0_15] : memref<48x32xf32, #tpu.memory_space<vmem>>, vector<48x32xf32>
    %cst_16 = arith.constant dense<0.000000e+00> : vector<32x32xf32>
    %32 = tpu.matmul %30, %31, %cst_16 {dimension_numbers = #tpu.dot_dimension_numbers<[1], [0], [0], [1], [0, 0, 1, 1], [], []>} : vector<32x48xf32>, vector<48x32xf32>, vector<32x32xf32> -> vector<32x32xf32>
    %c0_17 = arith.constant 0 : index
    %c0_18 = arith.constant 0 : index
    %33 = vector.load %arg5[%c0_17, %c0_18] : memref<1x32xf32, #tpu.memory_space<vmem>>, vector<1x32xf32>
    %34 = vector.broadcast %33 : vector<1x32xf32> to vector<32x32xf32>
    %35 = arith.addf %32, %34 : vector<32x32xf32>
    %36 = vector.shape_cast %35 : vector<32x32xf32> to vector<2x16x32xf32>
    %c0_19 = arith.constant 0 : index
    %c0_20 = arith.constant 0 : index
    %37 = vector.load %arg8[%c0_19, %c0_20] : memref<1x1xf32, #tpu.memory_space<vmem>>, vector<1x1xf32>
    %cst_21 = arith.constant 0.000000e+00 : f32
    %38 = vector.broadcast %cst_21 : f32 to vector<2x16x32xf32>
    %39 = arith.cmpf ogt, %36, %38 : vector<2x16x32xf32>
    %40 = vector.shape_cast %37 : vector<1x1xf32> to vector<1x1x1xf32>
    %41 = vector.broadcast %40 : vector<1x1x1xf32> to vector<2x16x32xf32>
    %42 = arith.mulf %41, %36 : vector<2x16x32xf32>
    %43 = arith.select %39, %36, %42 : vector<2x16x32xi1>, vector<2x16x32xf32>
    %cst_22 = arith.constant 0.000000e+00 : f32
    %44 = vector.broadcast %cst_22 : f32 to vector<2x1x32xf32>
    %45 = vector.extract_strided_slice %43 {offsets = [0, 0, 0], sizes = [2, 15, 32], strides = [1, 1, 1]} : vector<2x16x32xf32> to vector<2x15x32xf32>
    %46 = tpu.concatenate %44, %45 in 1 : vector<2x1x32xf32>, vector<2x15x32xf32> -> vector<2x16x32xf32>
    %47 = vector.extract_strided_slice %43 {offsets = [0, 1, 0], sizes = [2, 15, 32], strides = [1, 1, 1]} : vector<2x16x32xf32> to vector<2x15x32xf32>
    %48 = tpu.concatenate %47, %44 in 1 : vector<2x15x32xf32>, vector<2x1x32xf32> -> vector<2x16x32xf32>
    %49 = tpu.concatenate %46, %43, %48 in 2 : vector<2x16x32xf32>, vector<2x16x32xf32>, vector<2x16x32xf32> -> vector<2x16x96xf32>
    %50 = vector.shape_cast %49 : vector<2x16x96xf32> to vector<32x96xf32>
    %c0_23 = arith.constant 0 : index
    %c0_24 = arith.constant 0 : index
    %51 = vector.load %arg6[%c0_23, %c0_24] : memref<96x32xf32, #tpu.memory_space<vmem>>, vector<96x32xf32>
    %cst_25 = arith.constant dense<0.000000e+00> : vector<32x32xf32>
    %52 = tpu.matmul %50, %51, %cst_25 {dimension_numbers = #tpu.dot_dimension_numbers<[1], [0], [0], [1], [0, 0, 1, 1], [], []>} : vector<32x96xf32>, vector<96x32xf32>, vector<32x32xf32> -> vector<32x32xf32>
    %c0_26 = arith.constant 0 : index
    %c0_27 = arith.constant 0 : index
    %53 = vector.load %arg7[%c0_26, %c0_27] : memref<1x32xf32, #tpu.memory_space<vmem>>, vector<1x32xf32>
    %54 = vector.broadcast %53 : vector<1x32xf32> to vector<32x32xf32>
    %55 = arith.addf %52, %54 : vector<32x32xf32>
    %56 = vector.shape_cast %55 : vector<32x32xf32> to vector<2x16x32xf32>
    %c0_28 = arith.constant 0 : index
    %c0_29 = arith.constant 0 : index
    %57 = vector.load %arg11[%c0_28, %c0_29] : memref<1x1xf32, #tpu.memory_space<vmem>>, vector<1x1xf32>
    %cst_30 = arith.constant 0.000000e+00 : f32
    %58 = vector.broadcast %cst_30 : f32 to vector<2x16x32xf32>
    %59 = arith.cmpf ogt, %56, %58 : vector<2x16x32xf32>
    %60 = vector.shape_cast %57 : vector<1x1xf32> to vector<1x1x1xf32>
    %61 = vector.broadcast %60 : vector<1x1x1xf32> to vector<2x16x32xf32>
    %62 = arith.mulf %61, %56 : vector<2x16x32xf32>
    %63 = arith.select %59, %56, %62 : vector<2x16x32xi1>, vector<2x16x32xf32>
    %cst_31 = arith.constant 0.000000e+00 : f32
    %64 = vector.broadcast %cst_31 : f32 to vector<2x1x32xf32>
    %65 = vector.extract_strided_slice %63 {offsets = [0, 0, 0], sizes = [2, 15, 32], strides = [1, 1, 1]} : vector<2x16x32xf32> to vector<2x15x32xf32>
    %66 = tpu.concatenate %64, %65 in 1 : vector<2x1x32xf32>, vector<2x15x32xf32> -> vector<2x16x32xf32>
    %67 = vector.extract_strided_slice %63 {offsets = [0, 1, 0], sizes = [2, 15, 32], strides = [1, 1, 1]} : vector<2x16x32xf32> to vector<2x15x32xf32>
    %68 = tpu.concatenate %67, %64 in 1 : vector<2x15x32xf32>, vector<2x1x32xf32> -> vector<2x16x32xf32>
    %69 = tpu.concatenate %66, %63, %68 in 2 : vector<2x16x32xf32>, vector<2x16x32xf32>, vector<2x16x32xf32> -> vector<2x16x96xf32>
    %70 = vector.shape_cast %69 : vector<2x16x96xf32> to vector<32x96xf32>
    %c0_32 = arith.constant 0 : index
    %c0_33 = arith.constant 0 : index
    %71 = vector.load %arg9[%c0_32, %c0_33] : memref<96x32xf32, #tpu.memory_space<vmem>>, vector<96x32xf32>
    %cst_34 = arith.constant dense<0.000000e+00> : vector<32x32xf32>
    %72 = tpu.matmul %70, %71, %cst_34 {dimension_numbers = #tpu.dot_dimension_numbers<[1], [0], [0], [1], [0, 0, 1, 1], [], []>} : vector<32x96xf32>, vector<96x32xf32>, vector<32x32xf32> -> vector<32x32xf32>
    %c0_35 = arith.constant 0 : index
    %c0_36 = arith.constant 0 : index
    %73 = vector.load %arg10[%c0_35, %c0_36] : memref<1x32xf32, #tpu.memory_space<vmem>>, vector<1x32xf32>
    %74 = vector.broadcast %73 : vector<1x32xf32> to vector<32x32xf32>
    %75 = arith.addf %72, %74 : vector<32x32xf32>
    %76 = arith.addf %35, %75 : vector<32x32xf32>
    %c0_37 = arith.constant 0 : index
    %c0_38 = arith.constant 0 : index
    %77 = vector.load %arg12[%c0_37, %c0_38] : memref<32x32xf32, #tpu.memory_space<vmem>>, vector<32x32xf32>
    tpu.vector_store %arg12[%c0_37, %c0_38], %76 {strides = array<i32>} : memref<32x32xf32, #tpu.memory_space<vmem>>, vector<32x32xf32>,
    return
  }
}

</mosaic_0001>

<llo_original>
// kernel: tpu_custom_call.1
$region0: #{tpu_custom_call.1}
  #allocation0 [shape = 'u32[]', space=smem, size = 0x4, offset = 0x4, fixed_abs, tag = 'smem constant byte address 0x4 - core index']
  #allocation1 [shape = 'u32[144,128]{1,0:T(1,128)}', space=vmem, size = 0x12000, scoped, tag = 'internal scratch']
  #allocation2 [shape = 'f32[1,1]{1,0:T(1,128)S(1)}', space=vmem, size = 0x200, scoped, tag = 'scoped memory for tpu_custom_call.1']
  #allocation3 [shape = 'f32[1,1]{1,0:T(1,128)S(1)}', space=vmem, size = 0x200, scoped, tag = 'scoped memory for tpu_custom_call.1']
  %s0 = inlined_call_operand.vmem [shape: f32[32,64], index: 0, kind: input, shape index: {}]
  %s1 = inlined_call_operand.vmem [shape: f32[64,33], index: 1, kind: input, shape index: {}]
  %s2 = inlined_call_operand.vmem [shape: f32[64,33], index: 2, kind: input, shape index: {}]
  %s3 = inlined_call_operand.vmem [shape: f32[33,16], index: 3, kind: input, shape index: {}]
  %s4 = inlined_call_operand.vmem [shape: f32[48,32], index: 4, kind: input, shape index: {}]
  %s5 = inlined_call_operand.vmem [shape: f32[1,32], index: 5, kind: input, shape index: {}]
  %s6 = inlined_call_operand.vmem [shape: f32[96,32], index: 6, kind: input, shape index: {}]
  %s7 = inlined_call_operand.vmem [shape: f32[1,32], index: 7, kind: input, shape index: {}]
  %s8 = inlined_call_operand.<no memory space> [shape: f32[1,1], index: 8, kind: input, shape index: {}]
  %s9 = inlined_call_operand.vmem [shape: f32[96,32], index: 9, kind: input, shape index: {}]
  %s10 = inlined_call_operand.vmem [shape: f32[1,32], index: 10, kind: input, shape index: {}]
  %s11 = inlined_call_operand.<no memory space> [shape: f32[1,1], index: 11, kind: input, shape index: {}]
  %s12 = inlined_call_operand.hbm [shape: f32[32,32], index: 12, kind: output, shape index: {}]
  %s13 = sld [smem:[#allocation0]]
  $region58: #{tpu_custom_call.1} parent=0
    _
  %s15 = ssub.s32 1, %s13
  %s16 = scalar_select 0, %s15, %s13
  %v17 = vstv %s8
  %18 = vst [vmem:[#allocation2] sm:$0x1] %v17
  %v19 = vstv %s11
  %20 = vst [vmem:[#allocation3] sm:$0x1] %v19
  $region1: #{tpu_custom_call.1} parent=0
    #allocation4 [shape = 'u8[16384]{0}', space=vmem, size = 0x4000, scoped, tag = 'output window, operand 0, single buffered']
    #allocation5 [shape = 's32[1]{0}', space=sflag, size = 0x4, scoped, tag = 'scoped memory for tpu_custom_call.1']
    %21 = vsyncpa [#allocation5], 0
    // Predicated region
    $region2: #{tpu_custom_call.1} parent=1 // pred_check
      _
    $region3: #{tpu_custom_call.1} parent=1 // pred_check_branch
      %23 = sbr.rel (0) target = $region5
    $region4: #{tpu_custom_call.1} parent=1 // pred_region
      _
    $region5: #{tpu_custom_call.1} parent=1 // pred_fallthru
      _
    // Predicated region
    $region6: #{tpu_custom_call.1} parent=1 // pred_check
      _
    $region7: #{tpu_custom_call.1} parent=1 // pred_check_branch
      %25 = sbr.rel (0) target = $region9
    $region8: #{tpu_custom_call.1} parent=1 // pred_region
      _
    $region9: #{tpu_custom_call.1} parent=1 // pred_fallthru
      _
    // Predicated region
    $region10: #{tpu_custom_call.1} parent=1 // pred_check
      _
    $region11: #{tpu_custom_call.1} parent=1 // pred_check_branch
      %27 = sbr.rel (0) target = $region13
    $region12: #{tpu_custom_call.1} parent=1 // pred_region
      _
    $region13: #{tpu_custom_call.1} parent=1 // pred_fallthru
      _
    // Predicated region
    $region14: #{tpu_custom_call.1} parent=1 // pred_check
      _
    $region15: #{tpu_custom_call.1} parent=1 // pred_check_branch
      %29 = sbr.rel (0) target = $region17
    $region16: #{tpu_custom_call.1} parent=1 // pred_region
      _
    $region17: #{tpu_custom_call.1} parent=1 // pred_fallthru
      _
    // Predicated region
    $region18: #{tpu_custom_call.1} parent=1 // pred_check
      _
    $region19: #{tpu_custom_call.1} parent=1 // pred_check_branch
      %31 = sbr.rel (0) target = $region21
    $region20: #{tpu_custom_call.1} parent=1 // pred_region
      _
    $region21: #{tpu_custom_call.1} parent=1 // pred_fallthru
      _
    // Predicated region
    $region22: #{tpu_custom_call.1} parent=1 // pred_check
      _
    $region23: #{tpu_custom_call.1} parent=1 // pred_check_branch
      %33 = sbr.rel (0) target = $region25
    $region24: #{tpu_custom_call.1} parent=1 // pred_region
      _
    $region25: #{tpu_custom_call.1} parent=1 // pred_fallthru
      _
    // Predicated region
    $region26: #{tpu_custom_call.1} parent=1 // pred_check
      _
    $region27: #{tpu_custom_call.1} parent=1 // pred_check_branch
      %35 = sbr.rel (0) target = $region29
    $region28: #{tpu_custom_call.1} parent=1 // pred_region
      _
    $region29: #{tpu_custom_call.1} parent=1 // pred_fallthru
      _
    // Predicated region
    $region30: #{tpu_custom_call.1} parent=1 // pred_check
      _
    $region31: #{tpu_custom_call.1} parent=1 // pred_check_branch
      %37 = sbr.rel (0) target = $region33
    $region32: #{tpu_custom_call.1} parent=1 // pred_region
      _
    $region33: #{tpu_custom_call.1} parent=1 // pred_fallthru
      _
    // Predicated region
    $region34: #{tpu_custom_call.1} parent=1 // pred_check
      _
    $region35: #{tpu_custom_call.1} parent=1 // pred_check_branch
      %39 = sbr.rel (0) target = $region37
    $region36: #{tpu_custom_call.1} parent=1 // pred_region
      _
    $region37: #{tpu_custom_call.1} parent=1 // pred_fallthru
      _
    // Predicated region
    $region38: #{tpu_custom_call.1} parent=1 // pred_check
      _
    $region39: #{tpu_custom_call.1} parent=1 // pred_check_branch
      %41 = sbr.rel (0) target = $region41
    $region40: #{tpu_custom_call.1} parent=1 // pred_region
      _
    $region41: #{tpu_custom_call.1} parent=1 // pred_fallthru
      _
    // Predicated region
    $region42: #{tpu_custom_call.1} parent=1 // pred_check
      _
    $region43: #{tpu_custom_call.1} parent=1 // pred_check_branch
      %43 = sbr.rel (0) target = $region45
    $region44: #{tpu_custom_call.1} parent=1 // pred_region
      _
    $region45: #{tpu_custom_call.1} parent=1 // pred_fallthru
      _
    // Predicated region
    $region46: #{tpu_custom_call.1} parent=1 // pred_check
      _
    $region47: #{tpu_custom_call.1} parent=1 // pred_check_branch
      %45 = sbr.rel (0) target = $region49
    $region48: #{tpu_custom_call.1} parent=1 // pred_region
      _
    $region49: #{tpu_custom_call.1} parent=1 // pred_fallthru
      _
    %v46 = vld [vmem:[%s0] sm:$0xff]
    %v47 = vld [vmem:[%s0 + $0x8] sm:$0xff]
    %v48 = vld [vmem:[%s0 + $0x10] sm:$0xff]
    %v49 = vld [vmem:[%s0 + $0x18] sm:$0xff]
    %v50 = vld [vmem:[%s1] sm:$0xff]
    %v51 = vld [vmem:[%s1 + $0x8] sm:$0xff]
    %v52 = vld [vmem:[%s1 + $0x10] sm:$0xff]
    %v53 = vld [vmem:[%s1 + $0x18] sm:$0xff]
    %v54 = vld [vmem:[%s1 + $0x20] sm:$0xff]
    %v55 = vld [vmem:[%s1 + $0x28] sm:$0xff]
    %v56 = vld [vmem:[%s1 + $0x30] sm:$0xff]
    %v57 = vld [vmem:[%s1 + $0x38] sm:$0xff]
    %vm58 = vcmask 523264
    %v60 = vsel %vm58, %v46, 0
    %v63 = vsel %vm58, %v47, 0
    %v66 = vsel %vm58, %v48, 0
    %v69 = vsel %vm58, %v49, 0
    %71 = vmatprep.subr.mxu0 0.0
    %72 = vmatpush1.msra.mxu0 %v50
    %73 = vmatprep.subr.mxu0 0.0
    %74 = vmatpush1.msra.mxu0 %v51
    %75 = vmatprep.subr.mxu0 0.0
    %76 = vmatpush1.msra.mxu0 %v52
    %77 = vmatprep.subr.mxu0 0.0
    %78 = vmatpush1.msra.mxu0 %v53
    %79 = vmatprep.subr.mxu0 0.0
    %80 = vmatpush1.msra.mxu0 %v54
    %81 = vmatprep.subr.mxu0 0.0
    %82 = vmatpush1.msra.mxu0 %v55
    %83 = vmatprep.subr.mxu0 0.0
    %84 = vmatpush1.msra.mxu0 %v56
    %85 = vmatprep.subr.mxu0 0.0
    %86 = vmatpush1.msra.mxu0 %v57
    %87 = vmatprep.subr.mxu0 0.0
    %88 = vmatpush1.msra.mxu0 0.0
    %89 = vmatprep.subr.mxu0 0.0
    %90 = vmatpush1.msra.mxu0 0.0
    %91 = vmatprep.subr.mxu0 0.0
    %92 = vmatpush1.msra.mxu0 0.0
    %93 = vmatprep.subr.mxu0 0.0
    %94 = vmatpush1.msra.mxu0 0.0
    %95 = vmatprep.subr.mxu0 0.0
    %96 = vmatpush1.msra.mxu0 0.0
    %97 = vmatprep.subr.mxu0 0.0
    %98 = vmatpush1.msra.mxu0 0.0
    %99 = vmatprep.subr.mxu0 0.0
    %100 = vmatpush1.msra.mxu0 0.0
    %101 = vmatprep.subr.mxu0 0.0
    %102 = vmatpush1.msra.mxu0 0.0
    %103 = vmatprep.subr.mxu0 0.0
    %104 = vmatpush1.msra.mxu0 0.0
    %105 = vmatprep.subr.mxu0 0.0
    %106 = vmatpush1.msra.mxu0 0.0
    %107 = vmatprep.subr.mxu0 0.0
    %108 = vmatpush1.msra.mxu0 0.0
    %109 = vmatprep.subr.mxu0 0.0
    %110 = vmatpush1.msra.mxu0 0.0
    %111 = vmatprep.subr.mxu0 0.0
    %112 = vmatpush1.msra.mxu0 0.0
    %113 = vmatprep.subr.mxu0 0.0
    %114 = vmatpush1.msra.mxu0 0.0
    %115 = vmatprep.subr.mxu0 0.0
    %116 = vmatpush1.msra.mxu0 0.0
    %117 = vmatprep.subr.mxu0 0.0
    %118 = vmatpush1.msra.mxu0 0.0
    %119 = vmatprep.subr.mxu0 0.0
    %120 = vmatpush1.msra.mxu0 0.0
    %121 = vmatprep.subr.mxu0 0.0
    %122 = vmatpush1.msra.mxu0 0.0
    %123 = vmatprep.subr.mxu0 0.0
    %124 = vmatpush1.msra.mxu0 0.0
    %125 = vmatprep.subr.mxu0 0.0
    %126 = vmatpush1.msra.mxu0 0.0
    %127 = vmatprep.subr.mxu0 0.0
    %128 = vmatpush1.msra.mxu0 0.0
    %129 = vmatprep.subr.mxu0 0.0
    %130 = vmatpush1.msra.mxu0 0.0
    %131 = vmatprep.subr.mxu0 0.0
    %132 = vmatpush1.msra.mxu0 0.0
    %133 = vmatprep.subr.mxu0 0.0
    %134 = vmatpush1.msra.mxu0 0.0
    %135 = vmatprep.mubr.f32.mxu0 0.0
    %136 = vmatmul.mubr.f32.gmra.mrb[0].mxu0 %v60
    %v137 = vpop.f32.mrb[0].mxu0
    %v138 = vadd.f32 0.0, %v137
    %v139 = vpop.f32.mrb[0].mxu0
    %140 = vmatprep.mubr.f32.mxu0 0.0
    %141 = vmatmul.mubr.f32.gmra.mrb[0].mxu0 %v63
    %v142 = vpop.f32.mrb[0].mxu0
    %v143 = vadd.f32 0.0, %v142
    %v144 = vpop.f32.mrb[0].mxu0
    %145 = vmatprep.mubr.f32.mxu0 0.0
    %146 = vmatmul.mubr.f32.gmra.mrb[0].mxu0 %v66
    %v147 = vpop.f32.mrb[0].mxu0
    %v148 = vadd.f32 0.0, %v147
    %v149 = vpop.f32.mrb[0].mxu0
    %150 = vmatprep.mubr.f32.mxu0 0.0
    %151 = vmatmul.mubr.f32.gmra.mrb[0].mxu0 %v69
    %v152 = vpop.f32.mrb[0].mxu0
    %v153 = vadd.f32 0.0, %v152
    %v154 = vpop.f32.mrb[0].mxu0
    %155 = vdwg.mxu0
    %v156 = vld [vmem:[%s2] sm:$0xff]
    %v157 = vld [vmem:[%s2 + $0x8] sm:$0xff]
    %v158 = vld [vmem:[%s2 + $0x10] sm:$0xff]
    %v159 = vld [vmem:[%s2 + $0x18] sm:$0xff]
    %v160 = vld [vmem:[%s2 + $0x20] sm:$0xff]
    %v161 = vld [vmem:[%s2 + $0x28] sm:$0xff]
    %v162 = vld [vmem:[%s2 + $0x30] sm:$0xff]
    %v163 = vld [vmem:[%s2 + $0x38] sm:$0xff]
    %164 = vmatprep.subr.mxu0 0.0
    %165 = vmatpush1.msra.mxu0 %v156
    %166 = vmatprep.subr.mxu0 0.0
    %167 = vmatpush1.msra.mxu0 %v157
    %168 = vmatprep.subr.mxu0 0.0
    %169 = vmatpush1.msra.mxu0 %v158
    %170 = vmatprep.subr.mxu0 0.0
    %171 = vmatpush1.msra.mxu0 %v159
    %172 = vmatprep.subr.mxu0 0.0
    %173 = vmatpush1.msra.mxu0 %v160
    %174 = vmatprep.subr.mxu0 0.0
    %175 = vmatpush1.msra.mxu0 %v161
    %176 = vmatprep.subr.mxu0 0.0
    %177 = vmatpush1.msra.mxu0 %v162
    %178 = vmatprep.subr.mxu0 0.0
    %179 = vmatpush1.msra.mxu0 %v163
    %180 = vmatprep.subr.mxu0 0.0
    %181 = vmatpush1.msra.mxu0 0.0
    %182 = vmatprep.subr.mxu0 0.0
    %183 = vmatpush1.msra.mxu0 0.0
    %184 = vmatprep.subr.mxu0 0.0
    %185 = vmatpush1.msra.mxu0 0.0
    %186 = vmatprep.subr.mxu0 0.0
    %187 = vmatpush1.msra.mxu0 0.0
    %188 = vmatprep.subr.mxu0 0.0
    %189 = vmatpush1.msra.mxu0 0.0
    %190 = vmatprep.subr.mxu0 0.0
    %191 = vmatpush1.msra.mxu0 0.0
    %192 = vmatprep.subr.mxu0 0.0
    %193 = vmatpush1.msra.mxu0 0.0
    %194 = vmatprep.subr.mxu0 0.0
    %195 = vmatpush1.msra.mxu0 0.0
    %196 = vmatprep.subr.mxu0 0.0
    %197 = vmatpush1.msra.mxu0 0.0
    %198 = vmatprep.subr.mxu0 0.0
    %199 = vmatpush1.msra.mxu0 0.0
    %200 = vmatprep.subr.mxu0 0.0
    %201 = vmatpush1.msra.mxu0 0.0
    %202 = vmatprep.subr.mxu0 0.0
    %203 = vmatpush1.msra.mxu0 0.0
    %204 = vmatprep.subr.mxu0 0.0
    %205 = vmatpush1.msra.mxu0 0.0
    %206 = vmatprep.subr.mxu0 0.0
    %207 = vmatpush1.msra.mxu0 0.0
    %208 = vmatprep.subr.mxu0 0.0
    %209 = vmatpush1.msra.mxu0 0.0
    %210 = vmatprep.subr.mxu0 0.0
    %211 = vmatpush1.msra.mxu0 0.0
    %212 = vmatprep.subr.mxu0 0.0
    %213 = vmatpush1.msra.mxu0 0.0
    %214 = vmatprep.subr.mxu0 0.0
    %215 = vmatpush1.msra.mxu0 0.0
    %216 = vmatprep.subr.mxu0 0.0
    %217 = vmatpush1.msra.mxu0 0.0
    %218 = vmatprep.subr.mxu0 0.0
    %219 = vmatpush1.msra.mxu0 0.0
    %220 = vmatprep.subr.mxu0 0.0
    %221 = vmatpush1.msra.mxu0 0.0
    %222 = vmatprep.subr.mxu0 0.0
    %223 = vmatpush1.msra.mxu0 0.0
    %224 = vmatprep.subr.mxu0 0.0
    %225 = vmatpush1.msra.mxu0 0.0
    %226 = vmatprep.subr.mxu0 0.0
    %227 = vmatpush1.msra.mxu0 0.0
    %228 = vmatprep.mubr.f32.mxu0 0.0
    %229 = vmatmul.mubr.f32.gmra.mrb[0].mxu0 %v60
    %v230 = vpop.f32.mrb[0].mxu0
    %v231 = vadd.f32 0.0, %v230
    %v232 = vpop.f32.mrb[0].mxu0
    %233 = vmatprep.mubr.f32.mxu0 0.0
    %234 = vmatmul.mubr.f32.gmra.mrb[0].mxu0 %v63
    %v235 = vpop.f32.mrb[0].mxu0
    %v236 = vadd.f32 0.0, %v235
    %v237 = vpop.f32.mrb[0].mxu0
    %238 = vmatprep.mubr.f32.mxu0 0.0
    %239 = vmatmul.mubr.f32.gmra.mrb[0].mxu0 %v66
    %v240 = vpop.f32.mrb[0].mxu0
    %v241 = vadd.f32 0.0, %v240
    %v242 = vpop.f32.mrb[0].mxu0
    %243 = vmatprep.mubr.f32.mxu0 0.0
    %244 = vmatmul.mubr.f32.gmra.mrb[0].mxu0 %v69
    %v245 = vpop.f32.mrb[0].mxu0
    %v246 = vadd.f32 0.0, %v245
    %v247 = vpop.f32.mrb[0].mxu0
    %248 = vdwg.mxu0
    %v249 = vmul.f32 %v138, %v138
    %v250 = vmul.f32 %v143, %v143
    %v251 = vmul.f32 %v148, %v148
    %v252 = vmul.f32 %v153, %v153
    %v253 = vmul.f32 %v231, %v231
    %v254 = vmul.f32 %v236, %v236
    %v255 = vmul.f32 %v241, %v241
    %v256 = vmul.f32 %v246, %v246
    %v257 = vadd.f32 %v249, %v253
    %v258 = vadd.f32 %v250, %v254
    %v259 = vadd.f32 %v251, %v255
    %v260 = vadd.f32 %v252, %v256
    %v261 = vld [vmem:[%s3] sm:$0xff]
    %v262 = vld [vmem:[%s3 + $0x8] sm:$0xff]
    %v263 = vld [vmem:[%s3 + $0x10] sm:$0xff]
    %v264 = vld [vmem:[%s3 + $0x18] sm:$0xff]
    %v265 = vld [vmem:[%s3 + $0x20] sm:$0x1]
    %vm266 = vcmask 269312
    %v268 = vsel %vm266, %v257, 0
    %v271 = vsel %vm266, %v258, 0
    %v274 = vsel %vm266, %v259, 0
    %v277 = vsel %vm266, %v260, 0
    %vm279 = vcmask 1040384
    %v281 = vsel %vm279, %v265, 0
    %283 = vmatprep.subr.mxu0 0.0
    %284 = vmatpush1.msra.mxu0 %v261
    %285 = vmatprep.subr.mxu0 0.0
    %286 = vmatpush1.msra.mxu0 %v262
    %287 = vmatprep.subr.mxu0 0.0
    %288 = vmatpush1.msra.mxu0 %v263
    %289 = vmatprep.subr.mxu0 0.0
    %290 = vmatpush1.msra.mxu0 %v264
    %291 = vmatprep.subr.mxu0 0.0
    %292 = vmatpush1.msra.mxu0 %v281
    %293 = vmatprep.subr.mxu0 0.0
    %294 = vmatpush1.msra.mxu0 0.0
    %295 = vmatprep.subr.mxu0 0.0
    %296 = vmatpush1.msra.mxu0 0.0
    %297 = vmatprep.subr.mxu0 0.0
    %298 = vmatpush1.msra.mxu0 0.0
    %299 = vmatprep.subr.mxu0 0.0
    %300 = vmatpush1.msra.mxu0 0.0
    %301 = vmatprep.subr.mxu0 0.0
    %302 = vmatpush1.msra.mxu0 0.0
    %303 = vmatprep.subr.mxu0 0.0
    %304 = vmatpush1.msra.mxu0 0.0
    %305 = vmatprep.subr.mxu0 0.0
    %306 = vmatpush1.msra.mxu0 0.0
    %307 = vmatprep.subr.mxu0 0.0
    %308 = vmatpush1.msra.mxu0 0.0
    %309 = vmatprep.subr.mxu0 0.0
    %310 = vmatpush1.msra.mxu0 0.0
    %311 = vmatprep.subr.mxu0 0.0
    %312 = vmatpush1.msra.mxu0 0.0
    %313 = vmatprep.subr.mxu0 0.0
    %314 = vmatpush1.msra.mxu0 0.0
    %315 = vmatprep.subr.mxu0 0.0
    %316 = vmatpush1.msra.mxu0 0.0
    %317 = vmatprep.subr.mxu0 0.0
    %318 = vmatpush1.msra.mxu0 0.0
    %319 = vmatprep.subr.mxu0 0.0
    %320 = vmatpush1.msra.mxu0 0.0
    %321 = vmatprep.subr.mxu0 0.0
    %322 = vmatpush1.msra.mxu0 0.0
    %323 = vmatprep.subr.mxu0 0.0
    %324 = vmatpush1.msra.mxu0 0.0
    %325 = vmatprep.subr.mxu0 0.0
    %326 = vmatpush1.msra.mxu0 0.0
    %327 = vmatprep.subr.mxu0 0.0
    %328 = vmatpush1.msra.mxu0 0.0
    %329 = vmatprep.subr.mxu0 0.0
    %330 = vmatpush1.msra.mxu0 0.0
    %331 = vmatprep.subr.mxu0 0.0
    %332 = vmatpush1.msra.mxu0 0.0
    %333 = vmatprep.subr.mxu0 0.0
    %334 = vmatpush1.msra.mxu0 0.0
    %335 = vmatprep.subr.mxu0 0.0
    %336 = vmatpush1.msra.mxu0 0.0
    %337 = vmatprep.subr.mxu0 0.0
    %338 = vmatpush1.msra.mxu0 0.0
    %339 = vmatprep.subr.mxu0 0.0
    %340 = vmatpush1.msra.mxu0 0.0
    %341 = vmatprep.subr.mxu0 0.0
    %342 = vmatpush1.msra.mxu0 0.0
    %343 = vmatprep.subr.mxu0 0.0
    %344 = vmatpush1.msra.mxu0 0.0
    %345 = vmatprep.subr.mxu0 0.0
    %346 = vmatpush1.msra.mxu0 0.0
    %347 = vmatprep.mubr.f32.mxu0 0.0
    %348 = vmatmul.mubr.f32.gmra.mrb[0].mxu0 %v268
    %v349 = vpop.f32.mrb[0].mxu0
    %v350 = vadd.f32 0.0, %v349
    %v351 = vpop.f32.mrb[0].mxu0
    %352 = vmatprep.mubr.f32.mxu0 0.0
    %353 = vmatmul.mubr.f32.gmra.mrb[0].mxu0 %v271
    %v354 = vpop.f32.mrb[0].mxu0
    %v355 = vadd.f32 0.0, %v354
    %v356 = vpop.f32.mrb[0].mxu0
    %357 = vmatprep.mubr.f32.mxu0 0.0
    %358 = vmatmul.mubr.f32.gmra.mrb[0].mxu0 %v274
    %v359 = vpop.f32.mrb[0].mxu0
    %v360 = vadd.f32 0.0, %v359
    %v361 = vpop.f32.mrb[0].mxu0
    %362 = vmatprep.mubr.f32.mxu0 0.0
    %363 = vmatmul.mubr.f32.gmra.mrb[0].mxu0 %v277
    %v364 = vpop.f32.mrb[0].mxu0
    %v365 = vadd.f32 0.0, %v364
    %v366 = vpop.f32.mrb[0].mxu0
    %367 = vdwg.mxu0
    %v368 = vmul.f32 %v350, %v350
    %v369 = vmul.f32 %v355, %v355
    %v370 = vmul.f32 %v360, %v360
    %v371 = vmul.f32 %v365, %v365
    %vm372 = vcmask 130048
    %v373 = vsel %vm372, %v368, 0.0
    %374 = vadd.xlane.f32.xlu0 %v373
    %v375 = vpop.xlane.xlu0 %374
    %v376 = vsel %vm372, %v369, 0.0
    %377 = vadd.xlane.f32.xlu0 %v376
    %v378 = vpop.xlane.xlu0 %377
    %v379 = vsel %vm372, %v370, 0.0
    %380 = vadd.xlane.f32.xlu0 %v379
    %v381 = vpop.xlane.xlu0 %380
    %v382 = vsel %vm372, %v371, 0.0
    %383 = vadd.xlane.f32.xlu0 %v382
    %v384 = vpop.xlane.xlu0 %383
    %v385 = vadd.f32 %v375, %v378
    %v386 = vrot.slane %v385, 4
    %v387 = vadd.f32 %v385, %v386
    %v388 = vrot.slane %v387, 2
    %v389 = vadd.f32 %v387, %v388
    %v390 = vrot.slane %v389, 1
    %v391 = vadd.f32 %v389, %v390
    %v392 = vadd.f32 %v381, %v384
    %v393 = vrot.slane %v392, 4
    %v394 = vadd.f32 %v392, %v393
    %v395 = vrot.slane %v394, 2
    %v396 = vadd.f32 %v394, %v395
    %v397 = vrot.slane %v396, 1
    %v398 = vadd.f32 %v396, %v397
    %v399 = vmul.f32 %v391, 0.0625
    %v400 = vmul.f32 %v398, 0.0625
    %v401 = vrsqrt.pop %v399
    %v402 = vmul.f32 %v399, %v401
    %vm403 = vcmp.eq.f32.partialorder %v399, inf
    %v404 = vsel %vm403, %v399, %v402
    %vm405 = vcmp.eq.f32.partialorder %v399, 0.0
    %v406 = vand.u32 %v399, 2147483648
    %v407 = vsel %vm405, %v406, %v404
    %v408 = vrsqrt.pop %v400
    %v409 = vmul.f32 %v400, %v408
    %vm410 = vcmp.eq.f32.partialorder %v400, inf
    %v411 = vsel %vm410, %v400, %v409
    %vm412 = vcmp.eq.f32.partialorder %v400, 0.0
    %v413 = vand.u32 %v400, 2147483648
    %v414 = vsel %vm412, %v413, %v411
    %v415 = vmax.f32 %v407, 1e-05
    %v416 = vmax.f32 %v414, 1e-05
    %v417 = vrcp.pop %v415
    %v418 = vrcp.pop %v416
    %v419 = vmul.f32 %v350, %v417
    %v420 = vmul.f32 %v355, %v417
    %v421 = vmul.f32 %v360, %v418
    %v422 = vmul.f32 %v365, %v418
    %v427 = vrot.slane %v419, 7
    %v428 = vrot.slane %v420, 7
    %v429 = vsel %vm279, %v427, %v428
    %v430 = vrot.slane %v421, 7
    %v431 = vrot.slane %v422, 7
    %v432 = vsel %vm279, %v430, %v431
    %v437 = vsel %vm279, 0.0, %v427
    %v438 = vsel %vm279, 0.0, %v430
    %vm439 = vcmask 1046528
    %v440 = vrot.slane %v419, 1
    %v441 = vrot.slane %v420, 1
    %v442 = vsel %vm439, %v440, %v441
    %v443 = vrot.slane %v421, 1
    %v444 = vrot.slane %v422, 1
    %v445 = vsel %vm439, %v443, %v444
    %v448 = vsel %vm439, %v441, 0.0
    %v449 = vsel %vm439, %v444, 0.0
    %450 = vrot.lane.b32.xlu0 %v419, 16
    %v451 = vpop.permute.xlu0 %450
    %452 = vrot.lane.b32.xlu0 %v420, 16
    %v453 = vpop.permute.xlu0 %452
    %454 = vrot.lane.b32.xlu0 %v421, 16
    %v455 = vpop.permute.xlu0 %454
    %456 = vrot.lane.b32.xlu0 %v422, 16
    %v457 = vpop.permute.xlu0 %456
    %464 = vrot.lane.b32.xlu0 %v442, 32
    %v465 = vpop.permute.xlu0 %464
    %466 = vrot.lane.b32.xlu0 %v448, 32
    %v467 = vpop.permute.xlu0 %466
    %468 = vrot.lane.b32.xlu0 %v445, 32
    %v469 = vpop.permute.xlu0 %468
    %470 = vrot.lane.b32.xlu0 %v449, 32
    %v471 = vpop.permute.xlu0 %470
    %v476 = vsel %vm372, %v437, %v451
    %v477 = vsel %vm372, %v429, %v453
    %v478 = vsel %vm372, %v438, %v455
    %v479 = vsel %vm372, %v432, %v457
    %vm480 = vcmask 261120
    %v481 = vsel %vm480, %v476, %v465
    %v482 = vsel %vm480, %v477, %v467
    %v483 = vsel %vm480, %v478, %v469
    %v484 = vsel %vm480, %v479, %v471
    %v485 = vld [vmem:[%s4] sm:$0xff]
    %v486 = vld [vmem:[%s4 + $0x8] sm:$0xff]
    %v487 = vld [vmem:[%s4 + $0x10] sm:$0xff]
    %v488 = vld [vmem:[%s4 + $0x18] sm:$0xff]
    %v489 = vld [vmem:[%s4 + $0x20] sm:$0xff]
    %v490 = vld [vmem:[%s4 + $0x28] sm:$0xff]
    %v491 = vld [vmem:[%s5] sm:$0x1]
    %v493 = vlaneseq
    %v494 = vshrl.u32 %v493, 7
    %v495 = vsub.s32 0, %v494
    %v496 = vrot.slane %v491, %v495
    %vm498 = vcmask 392192
    %v500 = vsel %vm498, %v481, 0
    %v503 = vsel %vm498, %v482, 0
    %v506 = vsel %vm498, %v483, 0
    %v509 = vsel %vm498, %v484, 0
    %511 = vmatprep.subr.mxu0 0.0
    %512 = vmatpush1.msra.mxu0 %v485
    %513 = vmatprep.subr.mxu0 0.0
    %514 = vmatpush1.msra.mxu0 %v486
    %515 = vmatprep.subr.mxu0 0.0
    %516 = vmatpush1.msra.mxu0 %v487
    %517 = vmatprep.subr.mxu0 0.0
    %518 = vmatpush1.msra.mxu0 %v488
    %519 = vmatprep.subr.mxu0 0.0
    %520 = vmatpush1.msra.mxu0 %v489
    %521 = vmatprep.subr.mxu0 0.0
    %522 = vmatpush1.msra.mxu0 %v490
    %523 = vmatprep.subr.mxu0 0.0
    %524 = vmatpush1.msra.mxu0 0.0
    %525 = vmatprep.subr.mxu0 0.0
    %526 = vmatpush1.msra.mxu0 0.0
    %527 = vmatprep.subr.mxu0 0.0
    %528 = vmatpush1.msra.mxu0 0.0
    %529 = vmatprep.subr.mxu0 0.0
    %530 = vmatpush1.msra.mxu0 0.0
    %531 = vmatprep.subr.mxu0 0.0
    %532 = vmatpush1.msra.mxu0 0.0
    %533 = vmatprep.subr.mxu0 0.0
    %534 = vmatpush1.msra.mxu0 0.0
    %535 = vmatprep.subr.mxu0 0.0
    %536 = vmatpush1.msra.mxu0 0.0
    %537 = vmatprep.subr.mxu0 0.0
    %538 = vmatpush1.msra.mxu0 0.0
    %539 = vmatprep.subr.mxu0 0.0
    %540 = vmatpush1.msra.mxu0 0.0
    %541 = vmatprep.subr.mxu0 0.0
    %542 = vmatpush1.msra.mxu0 0.0
    %543 = vmatprep.subr.mxu0 0.0
    %544 = vmatpush1.msra.mxu0 0.0
    %545 = vmatprep.subr.mxu0 0.0
    %546 = vmatpush1.msra.mxu0 0.0
    %547 = vmatprep.subr.mxu0 0.0
    %548 = vmatpush1.msra.mxu0 0.0
    %549 = vmatprep.subr.mxu0 0.0
    %550 = vmatpush1.msra.mxu0 0.0
    %551 = vmatprep.subr.mxu0 0.0
    %552 = vmatpush1.msra.mxu0 0.0
    %553 = vmatprep.subr.mxu0 0.0
    %554 = vmatpush1.msra.mxu0 0.0
    %555 = vmatprep.subr.mxu0 0.0
    %556 = vmatpush1.msra.mxu0 0.0
    %557 = vmatprep.subr.mxu0 0.0
    %558 = vmatpush1.msra.mxu0 0.0
    %559 = vmatprep.subr.mxu0 0.0
    %560 = vmatpush1.msra.mxu0 0.0
    %561 = vmatprep.subr.mxu0 0.0
    %562 = vmatpush1.msra.mxu0 0.0
    %563 = vmatprep.subr.mxu0 0.0
    %564 = vmatpush1.msra.mxu0 0.0
    %565 = vmatprep.subr.mxu0 0.0
    %566 = vmatpush1.msra.mxu0 0.0
    %567 = vmatprep.subr.mxu0 0.0
    %568 = vmatpush1.msra.mxu0 0.0
    %569 = vmatprep.subr.mxu0 0.0
    %570 = vmatpush1.msra.mxu0 0.0
    %571 = vmatprep.subr.mxu0 0.0
    %572 = vmatpush1.msra.mxu0 0.0
    %573 = vmatprep.subr.mxu0 0.0
    %574 = vmatpush1.msra.mxu0 0.0
    %575 = vmatprep.mubr.f32.mxu0 0.0
    %576 = vmatmul.mubr.f32.gmra.mrb[0].mxu0 %v500
    %v577 = vpop.f32.mrb[0].mxu0
    %v578 = vadd.f32 %v496, %v577
    %v579 = vpop.f32.mrb[0].mxu0
    %580 = vmatprep.mubr.f32.mxu0 0.0
    %581 = vmatmul.mubr.f32.gmra.mrb[0].mxu0 %v503
    %v582 = vpop.f32.mrb[0].mxu0
    %v583 = vadd.f32 %v496, %v582
    %v584 = vpop.f32.mrb[0].mxu0
    %585 = vmatprep.mubr.f32.mxu0 0.0
    %586 = vmatmul.mubr.f32.gmra.mrb[0].mxu0 %v506
    %v587 = vpop.f32.mrb[0].mxu0
    %v588 = vadd.f32 %v496, %v587
    %v589 = vpop.f32.mrb[0].mxu0
    %590 = vmatprep.mubr.f32.mxu0 0.0
    %591 = vmatmul.mubr.f32.gmra.mrb[0].mxu0 %v509
    %v592 = vpop.f32.mrb[0].mxu0
    %v593 = vadd.f32 %v496, %v592
    %v594 = vpop.f32.mrb[0].mxu0
    %595 = vdwg.mxu0
    %v596 = vld [vmem:[#allocation2] sm:$0x1]
    %vm597 = vcmp.gt.f32.partialorder %v578, 0.0
    %vm598 = vcmp.gt.f32.partialorder %v583, 0.0
    %vm599 = vcmp.gt.f32.partialorder %v588, 0.0
    %vm600 = vcmp.gt.f32.partialorder %v593, 0.0
    %v602 = vlaneseq
    %v603 = vshrl.u32 %v602, 7
    %v604 = vsub.s32 0, %v603
    %v605 = vrot.slane %v596, %v604
    %606 = vset.pattern.permute.xlu0 0
    %607 = vperm.xlu0 %606, %v605
    %v608 = vpop.permute.xlu0 %607
    %v610 = vmul.f32 %v608, %v578
    %v611 = vmul.f32 %v608, %v583
    %v612 = vmul.f32 %v608, %v588
    %v613 = vmul.f32 %v608, %v593
    %v614 = vsel %vm597, %v578, %v610
    %v615 = vsel %vm598, %v583, %v611
    %v616 = vsel %vm599, %v588, %v612
    %v617 = vsel %vm600, %v593, %v613
    %v622 = vrot.slane %v614, 7
    %v623 = vrot.slane %v615, 7
    %v624 = vsel %vm279, %v622, %v623
    %v625 = vrot.slane %v616, 7
    %v626 = vrot.slane %v617, 7
    %v627 = vsel %vm279, %v625, %v626
    %v632 = vsel %vm279, 0.0, %v622
    %v633 = vsel %vm279, 0.0, %v625
    %v634 = vrot.slane %v614, 1
    %v635 = vrot.slane %v615, 1
    %v636 = vsel %vm439, %v634, %v635
    %v637 = vrot.slane %v616, 1
    %v638 = vrot.slane %v617, 1
    %v639 = vsel %vm439, %v637, %v638
    %v642 = vsel %vm439, %v635, 0.0
    %v643 = vsel %vm439, %v638, 0.0
    %644 = vrot.lane.b32.xlu0 %v614, 32
    %v645 = vpop.permute.xlu0 %644
    %646 = vrot.lane.b32.xlu0 %v615, 32
    %v647 = vpop.permute.xlu0 %646
    %648 = vrot.lane.b32.xlu0 %v616, 32
    %v649 = vpop.permute.xlu0 %648
    %650 = vrot.lane.b32.xlu0 %v617, 32
    %v651 = vpop.permute.xlu0 %650
    %658 = vrot.lane.b32.xlu0 %v636, 64
    %v659 = vpop.permute.xlu0 %658
    %660 = vrot.lane.b32.xlu0 %v642, 64
    %v661 = vpop.permute.xlu0 %660
    %662 = vrot.lane.b32.xlu0 %v639, 64
    %v663 = vpop.permute.xlu0 %662
    %664 = vrot.lane.b32.xlu0 %v643, 64
    %v665 = vpop.permute.xlu0 %664
    %v670 = vsel %vm480, %v632, %v645
    %v671 = vsel %vm480, %v624, %v647
    %v672 = vsel %vm480, %v633, %v649
    %v673 = vsel %vm480, %v627, %v651
    %v674 = vsel %vm58, %v670, %v659
    %v675 = vsel %vm58, %v671, %v661
    %v676 = vsel %vm58, %v672, %v663
    %v677 = vsel %vm58, %v673, %v665
    %v678 = vld [vmem:[%s6] sm:$0xff]
    %v679 = vld [vmem:[%s6 + $0x8] sm:$0xff]
    %v680 = vld [vmem:[%s6 + $0x10] sm:$0xff]
    %v681 = vld [vmem:[%s6 + $0x18] sm:$0xff]
    %v682 = vld [vmem:[%s6 + $0x20] sm:$0xff]
    %v683 = vld [vmem:[%s6 + $0x28] sm:$0xff]
    %v684 = vld [vmem:[%s6 + $0x30] sm:$0xff]
    %v685 = vld [vmem:[%s6 + $0x38] sm:$0xff]
    %v686 = vld [vmem:[%s6 + $0x40] sm:$0xff]
    %v687 = vld [vmem:[%s6 + $0x48] sm:$0xff]
    %v688 = vld [vmem:[%s6 + $0x50] sm:$0xff]
    %v689 = vld [vmem:[%s6 + $0x58] sm:$0xff]
    %v690 = vld [vmem:[%s7] sm:$0x1]
    %v692 = vlaneseq
    %v693 = vshrl.u32 %v692, 7
    %v694 = vsub.s32 0, %v693
    %v695 = vrot.slane %v690, %v694
    %vm697 = vcmask 785408
    %v699 = vsel %vm697, %v674, 0
    %v702 = vsel %vm697, %v675, 0
    %v705 = vsel %vm697, %v676, 0
    %v708 = vsel %vm697, %v677, 0
    %710 = vmatprep.subr.mxu0 0.0
    %711 = vmatpush1.msra.mxu0 %v678
    %712 = vmatprep.subr.mxu0 0.0
    %713 = vmatpush1.msra.mxu0 %v679
    %714 = vmatprep.subr.mxu0 0.0
    %715 = vmatpush1.msra.mxu0 %v680
    %716 = vmatprep.subr.mxu0 0.0
    %717 = vmatpush1.msra.mxu0 %v681
    %718 = vmatprep.subr.mxu0 0.0
    %719 = vmatpush1.msra.mxu0 %v682
    %720 = vmatprep.subr.mxu0 0.0
    %721 = vmatpush1.msra.mxu0 %v683
    %722 = vmatprep.subr.mxu0 0.0
    %723 = vmatpush1.msra.mxu0 %v684
    %724 = vmatprep.subr.mxu0 0.0
    %725 = vmatpush1.msra.mxu0 %v685
    %726 = vmatprep.subr.mxu0 0.0
    %727 = vmatpush1.msra.mxu0 %v686
    %728 = vmatprep.subr.mxu0 0.0
    %729 = vmatpush1.msra.mxu0 %v687
    %730 = vmatprep.subr.mxu0 0.0
    %731 = vmatpush1.msra.mxu0 %v688
    %732 = vmatprep.subr.mxu0 0.0
    %733 = vmatpush1.msra.mxu0 %v689
    %734 = vmatprep.subr.mxu0 0.0
    %735 = vmatpush1.msra.mxu0 0.0
    %736 = vmatprep.subr.mxu0 0.0
    %737 = vmatpush1.msra.mxu0 0.0
    %738 = vmatprep.subr.mxu0 0.0
    %739 = vmatpush1.msra.mxu0 0.0
    %740 = vmatprep.subr.mxu0 0.0
    %741 = vmatpush1.msra.mxu0 0.0
    %742 = vmatprep.subr.mxu0 0.0
    %743 = vmatpush1.msra.mxu0 0.0
    %744 = vmatprep.subr.mxu0 0.0
    %745 = vmatpush1.msra.mxu0 0.0
    %746 = vmatprep.subr.mxu0 0.0
    %747 = vmatpush1.msra.mxu0 0.0
    %748 = vmatprep.subr.mxu0 0.0
    %749 = vmatpush1.msra.mxu0 0.0
    %750 = vmatprep.subr.mxu0 0.0
    %751 = vmatpush1.msra.mxu0 0.0
    %752 = vmatprep.subr.mxu0 0.0
    %753 = vmatpush1.msra.mxu0 0.0
    %754 = vmatprep.subr.mxu0 0.0
    %755 = vmatpush1.msra.mxu0 0.0
    %756 = vmatprep.subr.mxu0 0.0
    %757 = vmatpush1.msra.mxu0 0.0
    %758 = vmatprep.subr.mxu0 0.0
    %759 = vmatpush1.msra.mxu0 0.0
    %760 = vmatprep.subr.mxu0 0.0
    %761 = vmatpush1.msra.mxu0 0.0
    %762 = vmatprep.subr.mxu0 0.0
    %763 = vmatpush1.msra.mxu0 0.0
    %764 = vmatprep.subr.mxu0 0.0
    %765 = vmatpush1.msra.mxu0 0.0
    %766 = vmatprep.subr.mxu0 0.0
    %767 = vmatpush1.msra.mxu0 0.0
    %768 = vmatprep.subr.mxu0 0.0
    %769 = vmatpush1.msra.mxu0 0.0
    %770 = vmatprep.subr.mxu0 0.0
    %771 = vmatpush1.msra.mxu0 0.0
    %772 = vmatprep.subr.mxu0 0.0
    %773 = vmatpush1.msra.mxu0 0.0
    %774 = vmatprep.mubr.f32.mxu0 0.0
    %775 = vmatmul.mubr.f32.gmra.mrb[0].mxu0 %v699
    %v776 = vpop.f32.mrb[0].mxu0
    %v777 = vadd.f32 %v695, %v776
    %v778 = vpop.f32.mrb[0].mxu0
    %779 = vmatprep.mubr.f32.mxu0 0.0
    %780 = vmatmul.mubr.f32.gmra.mrb[0].mxu0 %v702
    %v781 = vpop.f32.mrb[0].mxu0
    %v782 = vadd.f32 %v695, %v781
    %v783 = vpop.f32.mrb[0].mxu0
    %784 = vmatprep.mubr.f32.mxu0 0.0
    %785 = vmatmul.mubr.f32.gmra.mrb[0].mxu0 %v705
    %v786 = vpop.f32.mrb[0].mxu0
    %v787 = vadd.f32 %v695, %v786
    %v788 = vpop.f32.mrb[0].mxu0
    %789 = vmatprep.mubr.f32.mxu0 0.0
    %790 = vmatmul.mubr.f32.gmra.mrb[0].mxu0 %v708
    %v791 = vpop.f32.mrb[0].mxu0
    %v792 = vadd.f32 %v695, %v791
    %v793 = vpop.f32.mrb[0].mxu0
    %794 = vdwg.mxu0
    %v795 = vld [vmem:[#allocation3] sm:$0x1]
    %vm796 = vcmp.gt.f32.partialorder %v777, 0.0
    %vm797 = vcmp.gt.f32.partialorder %v782, 0.0
    %vm798 = vcmp.gt.f32.partialorder %v787, 0.0
    %vm799 = vcmp.gt.f32.partialorder %v792, 0.0
    %v801 = vlaneseq
    %v802 = vshrl.u32 %v801, 7
    %v803 = vsub.s32 0, %v802
    %v804 = vrot.slane %v795, %v803
    %805 = vset.pattern.permute.xlu0 0
    %806 = vperm.xlu0 %805, %v804
    %v807 = vpop.permute.xlu0 %806
    %v809 = vmul.f32 %v807, %v777
    %v810 = vmul.f32 %v807, %v782
    %v811 = vmul.f32 %v807, %v787
    %v812 = vmul.f32 %v807, %v792
    %v813 = vsel %vm796, %v777, %v809
    %v814 = vsel %vm797, %v782, %v810
    %v815 = vsel %vm798, %v787, %v811
    %v816 = vsel %vm799, %v792, %v812
    %v821 = vrot.slane %v813, 7
    %v822 = vrot.slane %v814, 7
    %v823 = vsel %vm279, %v821, %v822
    %v824 = vrot.slane %v815, 7
    %v825 = vrot.slane %v816, 7
    %v826 = vsel %vm279, %v824, %v825
    %v831 = vsel %vm279, 0.0, %v821
    %v832 = vsel %vm279, 0.0, %v824
    %v833 = vrot.slane %v813, 1
    %v834 = vrot.slane %v814, 1
    %v835 = vsel %vm439, %v833, %v834
    %v836 = vrot.slane %v815, 1
    %v837 = vrot.slane %v816, 1
    %v838 = vsel %vm439, %v836, %v837
    %v841 = vsel %vm439, %v834, 0.0
    %v842 = vsel %vm439, %v837, 0.0
    %843 = vrot.lane.b32.xlu0 %v813, 32
    %v844 = vpop.permute.xlu0 %843
    %845 = vrot.lane.b32.xlu0 %v814, 32
    %v846 = vpop.permute.xlu0 %845
    %847 = vrot.lane.b32.xlu0 %v815, 32
    %v848 = vpop.permute.xlu0 %847
    %849 = vrot.lane.b32.xlu0 %v816, 32
    %v850 = vpop.permute.xlu0 %849
    %857 = vrot.lane.b32.xlu0 %v835, 64
    %v858 = vpop.permute.xlu0 %857
    %859 = vrot.lane.b32.xlu0 %v841, 64
    %v860 = vpop.permute.xlu0 %859
    %861 = vrot.lane.b32.xlu0 %v838, 64
    %v862 = vpop.permute.xlu0 %861
    %863 = vrot.lane.b32.xlu0 %v842, 64
    %v864 = vpop.permute.xlu0 %863
    %v869 = vsel %vm480, %v831, %v844
    %v870 = vsel %vm480, %v823, %v846
    %v871 = vsel %vm480, %v832, %v848
    %v872 = vsel %vm480, %v826, %v850
    %v873 = vsel %vm58, %v869, %v858
    %v874 = vsel %vm58, %v870, %v860
    %v875 = vsel %vm58, %v871, %v862
    %v876 = vsel %vm58, %v872, %v864
    %v877 = vld [vmem:[%s9] sm:$0xff]
    %v878 = vld [vmem:[%s9 + $0x8] sm:$0xff]
    %v879 = vld [vmem:[%s9 + $0x10] sm:$0xff]
    %v880 = vld [vmem:[%s9 + $0x18] sm:$0xff]
    %v881 = vld [vmem:[%s9 + $0x20] sm:$0xff]
    %v882 = vld [vmem:[%s9 + $0x28] sm:$0xff]
    %v883 = vld [vmem:[%s9 + $0x30] sm:$0xff]
    %v884 = vld [vmem:[%s9 + $0x38] sm:$0xff]
    %v885 = vld [vmem:[%s9 + $0x40] sm:$0xff]
    %v886 = vld [vmem:[%s9 + $0x48] sm:$0xff]
    %v887 = vld [vmem:[%s9 + $0x50] sm:$0xff]
    %v888 = vld [vmem:[%s9 + $0x58] sm:$0xff]
    %v889 = vld [vmem:[%s10] sm:$0x1]
    %v891 = vlaneseq
    %v892 = vshrl.u32 %v891, 7
    %v893 = vsub.s32 0, %v892
    %v894 = vrot.slane %v889, %v893
    %v897 = vsel %vm697, %v873, 0
    %v900 = vsel %vm697, %v874, 0
    %v903 = vsel %vm697, %v875, 0
    %v906 = vsel %vm697, %v876, 0
    %908 = vmatprep.subr.mxu0 0.0
    %909 = vmatpush1.msra.mxu0 %v877
    %910 = vmatprep.subr.mxu0 0.0
    %911 = vmatpush1.msra.mxu0 %v878
    %912 = vmatprep.subr.mxu0 0.0
    %913 = vmatpush1.msra.mxu0 %v879
    %914 = vmatprep.subr.mxu0 0.0
    %915 = vmatpush1.msra.mxu0 %v880
    %916 = vmatprep.subr.mxu0 0.0
    %917 = vmatpush1.msra.mxu0 %v881
    %918 = vmatprep.subr.mxu0 0.0
    %919 = vmatpush1.msra.mxu0 %v882
    %920 = vmatprep.subr.mxu0 0.0
    %921 = vmatpush1.msra.mxu0 %v883
    %922 = vmatprep.subr.mxu0 0.0
    %923 = vmatpush1.msra.mxu0 %v884
    %924 = vmatprep.subr.mxu0 0.0
    %925 = vmatpush1.msra.mxu0 %v885
    %926 = vmatprep.subr.mxu0 0.0
    %927 = vmatpush1.msra.mxu0 %v886
    %928 = vmatprep.subr.mxu0 0.0
    %929 = vmatpush1.msra.mxu0 %v887
    %930 = vmatprep.subr.mxu0 0.0
    %931 = vmatpush1.msra.mxu0 %v888
    %932 = vmatprep.subr.mxu0 0.0
    %933 = vmatpush1.msra.mxu0 0.0
    %934 = vmatprep.subr.mxu0 0.0
    %935 = vmatpush1.msra.mxu0 0.0
    %936 = vmatprep.subr.mxu0 0.0
    %937 = vmatpush1.msra.mxu0 0.0
    %938 = vmatprep.subr.mxu0 0.0
    %939 = vmatpush1.msra.mxu0 0.0
    %940 = vmatprep.subr.mxu0 0.0
    %941 = vmatpush1.msra.mxu0 0.0
    %942 = vmatprep.subr.mxu0 0.0
    %943 = vmatpush1.msra.mxu0 0.0
    %944 = vmatprep.subr.mxu0 0.0
    %945 = vmatpush1.msra.mxu0 0.0
    %946 = vmatprep.subr.mxu0 0.0
    %947 = vmatpush1.msra.mxu0 0.0
    %948 = vmatprep.subr.mxu0 0.0
    %949 = vmatpush1.msra.mxu0 0.0
    %950 = vmatprep.subr.mxu0 0.0
    %951 = vmatpush1.msra.mxu0 0.0
    %952 = vmatprep.subr.mxu0 0.0
    %953 = vmatpush1.msra.mxu0 0.0
    %954 = vmatprep.subr.mxu0 0.0
    %955 = vmatpush1.msra.mxu0 0.0
    %956 = vmatprep.subr.mxu0 0.0
    %957 = vmatpush1.msra.mxu0 0.0
    %958 = vmatprep.subr.mxu0 0.0
    %959 = vmatpush1.msra.mxu0 0.0
    %960 = vmatprep.subr.mxu0 0.0
    %961 = vmatpush1.msra.mxu0 0.0
    %962 = vmatprep.subr.mxu0 0.0
    %963 = vmatpush1.msra.mxu0 0.0
    %964 = vmatprep.subr.mxu0 0.0
    %965 = vmatpush1.msra.mxu0 0.0
    %966 = vmatprep.subr.mxu0 0.0
    %967 = vmatpush1.msra.mxu0 0.0
    %968 = vmatprep.subr.mxu0 0.0
    %969 = vmatpush1.msra.mxu0 0.0
    %970 = vmatprep.subr.mxu0 0.0
    %971 = vmatpush1.msra.mxu0 0.0
    %972 = vmatprep.mubr.f32.mxu0 0.0
    %973 = vmatmul.mubr.f32.gmra.mrb[0].mxu0 %v897
    %v974 = vpop.f32.mrb[0].mxu0
    %v975 = vadd.f32 %v894, %v974
    %v976 = vpop.f32.mrb[0].mxu0
    %977 = vmatprep.mubr.f32.mxu0 0.0
    %978 = vmatmul.mubr.f32.gmra.mrb[0].mxu0 %v900
    %v979 = vpop.f32.mrb[0].mxu0
    %v980 = vadd.f32 %v894, %v979
    %v981 = vpop.f32.mrb[0].mxu0
    %982 = vmatprep.mubr.f32.mxu0 0.0
    %983 = vmatmul.mubr.f32.gmra.mrb[0].mxu0 %v903
    %v984 = vpop.f32.mrb[0].mxu0
    %v985 = vadd.f32 %v894, %v984
    %v986 = vpop.f32.mrb[0].mxu0
    %987 = vmatprep.mubr.f32.mxu0 0.0
    %988 = vmatmul.mubr.f32.gmra.mrb[0].mxu0 %v906
    %v989 = vpop.f32.mrb[0].mxu0
    %v990 = vadd.f32 %v894, %v989
    %v991 = vpop.f32.mrb[0].mxu0
    %992 = vdwg.mxu0
    %v993 = vadd.f32 %v578, %v975
    %v994 = vadd.f32 %v583, %v980
    %v995 = vadd.f32 %v588, %v985
    %v996 = vadd.f32 %v593, %v990
    %997 = vst.msk [vmem:[#allocation4] sm:$0xff] %vm480, %v993
    %998 = vst.msk [vmem:[#allocation4 + $0x8] sm:$0xff] %vm480, %v994
    %999 = vst.msk [vmem:[#allocation4 + $0x10] sm:$0xff] %vm480, %v995
    %1000 = vst.msk [vmem:[#allocation4 + $0x18] sm:$0xff] %vm480, %v996
    // Predicated region
    $region50: #{tpu_custom_call.1} parent=1 // pred_check
      _
    $region51: #{tpu_custom_call.1} parent=1 // pred_check_branch
      %1002 = sbr.rel (0) target = $region53
    $region52: #{tpu_custom_call.1} parent=1 // pred_region
      %s1004 = ssub.s32 512, 512
      %1005 = vsyncadd [#allocation5], %s1004
      %s1006 = sshll.u32 [#allocation4], 4
      %s1007 = int_to_ptr.vmem [resolvable:$true] %s1006
      %1012 = dma.vmem_to_hbm [thread:$0]  %s1007, 512, %s12, [#allocation5], 128, 128, 8
    $region53: #{tpu_custom_call.1} parent=1 // pred_fallthru
      _
    // Predicated region
    $region54: #{tpu_custom_call.1} parent=1 // pred_check
      _
    $region55: #{tpu_custom_call.1} parent=1 // pred_check_branch
      %1014 = sbr.rel (0) target = $region57
    $region56: #{tpu_custom_call.1} parent=1 // pred_region
      %1015 = dma.done [#allocation5], 512
    $region57: #{tpu_custom_call.1} parent=1 // pred_fallthru
      _
    %1016 = vsyncpa [#allocation5], 1

</llo_original>
